<compile_context>
chip_gen: v7x
topology: tpu7x:2x2x1
jax: 0.10.0
libtpu: 0.0.40
codegen_flags: <defaults>
</compile_context>

<pallas_src>
import math
from functools import partial

import jax
import jax.numpy as jnp
from jax.experimental import pallas as pl
from jax.experimental.pallas import tpu as pltpu


def _pe_table(S, D):
    """The module's exact pe formula (f32): angle = pos * 10000^(2i/D).
    Note: for large S the highest-frequency angles are huge and f32 sin/cos of them
    is numerically meaningless -- faithful to the original module."""
    pos = jnp.arange(S, dtype=jnp.float32)[:, None]
    div_term = jnp.exp(-jnp.arange(0, D, 2, dtype=jnp.float32)
                       * (math.log(10000.0) / D))
    pe = jnp.zeros((S, D), jnp.float32)
    pe = pe.at[:, 0::2].set(jnp.sin(pos / div_term))
    pe = pe.at[:, 1::2].set(jnp.cos(pos / div_term))
    return pe


def pos_encoding_kernel(seed_ref, x_ref, pe_ref, o_ref, *, seq_len, tile_s,
                        dropout_p, training):
    # x_ref: (B, tile_s, D), pe_ref: (tile_s, D) -> add broadcasts over batch.
    y = x_ref[...] + pe_ref[...]

    if training and dropout_p > 0.0:
        B, TS, D = x_ref.shape
        i = pl.program_id(0)
        # Unique element index within the full (B, S, D) array (wrap mod 2^32 is
        # fine for a hash input).
        b_idx = jax.lax.broadcasted_iota(jnp.int32, (B, TS, D), 0)
        s_idx = jax.lax.broadcasted_iota(jnp.int32, (B, TS, D), 1) + i * tile_s
        d_idx = jax.lax.broadcasted_iota(jnp.int32, (B, TS, D), 2)
        idx = (b_idx * seq_len + s_idx) * D + d_idx
        # murmur3-style finalizer keyed on the seed -> uniform uint32 per element.
        h = idx.astype(jnp.uint32) + seed_ref[0].astype(jnp.uint32) * jnp.uint32(0x9E3779B9)
        h = h ^ (h >> jnp.uint32(16))
        h = h * jnp.uint32(0x85EBCA6B)
        h = h ^ (h >> jnp.uint32(13))
        h = h * jnp.uint32(0xC2B2AE35)
        h = h ^ (h >> jnp.uint32(16))
        # Keep with prob (1 - p): integer-domain threshold compare.
        thr = jnp.uint32(min(int(round(dropout_p * 2.0 ** 32)), 2 ** 32 - 1))
        keep = h >= thr
        scale = jnp.asarray(1.0 / (1.0 - dropout_p), y.dtype)
        y = jnp.where(keep, y * scale, 0.0)

    o_ref[...] = y.astype(o_ref.dtype)


def _choose_tile_s(B, S, D, itemsize, budget_bytes=24 << 20):
    """Largest divisor of S that is sublane-aligned (or == S) and whose
    double-buffered in/out/pe tiles fit a VMEM budget safe for v5e/v6e/v7x."""
    sub = max(8, 32 // max(int(itemsize), 1))   # 8 for f32, 16 for bf16, 32 for i8
    def tile_bytes(ts):
        # x-in + x-out + pe-in, each double-buffered by the pipeline.
        return 2 * (2 * B * ts * D + ts * D) * itemsize
    chosen = S
    for ts in range(S, 0, -1):
        if S % ts:
            continue
        if ts != S and ts % sub:
            continue
        chosen = ts
        if tile_bytes(ts) <= budget_bytes:
            break
    return chosen


def position_encoding(x, seed=0, *, dropout_p=0.1, training=True, tile_s=None):
    """x: [B, S, D]. Returns dropout(x + pe[:S]) (eval mode: dropout = identity)."""
    B, S, D = x.shape
    itemsize = jnp.dtype(x.dtype).itemsize
    if tile_s is None:
        tile_s = _choose_tile_s(B, S, D, itemsize)
    sub = max(8, 32 // max(int(itemsize), 1))
    assert S % tile_s == 0, "tile_s must divide seq_len"
    assert tile_s == S or tile_s % sub == 0, "tile_s must be sublane-aligned"
    grid = (S // tile_s,)

    # pe computed once (f32, exact module formula), cast to x.dtype so the add and
    # dropout select stay in the input dtype (bf16-native on v6e/v7x).
    pe = _pe_table(S, D).astype(x.dtype)
    seed_arr = jnp.asarray([seed], dtype=jnp.int32)

    kernel = partial(pos_encoding_kernel, seq_len=S, tile_s=tile_s,
                     dropout_p=float(dropout_p), training=bool(training))

    # Double-buffered tile footprint + slack; default scoped VMEM can be too small.
    tile_bytes = 2 * (2 * B * tile_s * D + tile_s * D) * itemsize
    vmem_limit = int(max(tile_bytes + (2 << 20), 16 << 20))

    # TODO(synk): with D < 128 the output stores are lane-masked; for real models
    # keep d_model a multiple of 128 for full store bandwidth.
    return pl.pallas_call(
        kernel,
        out_shape=jax.ShapeDtypeStruct((B, S, D), x.dtype),
        grid=grid,
        in_specs=[
            pl.BlockSpec(memory_space=pltpu.SMEM),                 # seed scalar
            pl.BlockSpec((B, tile_s, D), lambda i: (0, i, 0)),     # x tile
            pl.BlockSpec((tile_s, D), lambda i: (i, 0)),           # pe tile
        ],
        out_specs=pl.BlockSpec((B, tile_s, D), lambda i: (0, i, 0)),
        compiler_params=pltpu.CompilerParams(
            dimension_semantics=("parallel",),   # tiles independent -> v7x megacore
            vmem_limit_bytes=vmem_limit),
    )(seed_arr, x, pe)


def _reference_eval(x):
    """Pure-JAX reference of the module in eval mode (dropout = identity)."""
    B, S, D = x.shape
    return x + _pe_table(S, D)[None, :, :]


if __name__ == "__main__":
    B, S, D = 2, 8, 32
    key = jax.random.PRNGKey(0)
    x = jax.random.normal(key, (B, S, D), dtype=jnp.float32)

    # eval mode (dropout off): must match the pure-JAX reference.
    out_eval = jax.block_until_ready(
        position_encoding(x, seed=0, dropout_p=0.1, training=False))
    ref = _reference_eval(x)
    assert out_eval.shape == (B, S, D)
    assert jnp.allclose(out_eval, ref, atol=1e-5, rtol=1e-5), "mismatch vs reference"

    # training mode: every element is either 0 (dropped) or (x+pe)/(1-p) (kept),
    # deterministic given the seed.
    p = 0.1
    out_train = jax.block_until_ready(
        position_encoding(x, seed=123, dropout_p=p, training=True))
    assert out_train.shape == (B, S, D)
    scaled = ref / (1.0 - p)
    is_zero = jnp.isclose(out_train, 0.0, atol=1e-6)
    is_kept = jnp.isclose(out_train, scaled, atol=1e-4, rtol=1e-4)
    assert bool(jnp.all(is_zero | is_kept)), "dropout output not in {0, scaled}"
    assert bool(jnp.any(is_zero)) and bool(jnp.any(is_kept)), "degenerate dropout mask"

    print("KERNEL_OK")
</pallas_src>

<mosaic_0001>
module attributes {stable_mosaic.version = 11 : i64} {
  func.func @pos_encoding_kernel(%arg0: i32, %arg1: memref<1xi32, #tpu.memory_space<smem>>, %arg2: memref<2x8x32xf32, #tpu.memory_space<vmem>>, %arg3: memref<8x32xf32, #tpu.memory_space<vmem>>, %arg4: memref<2x8x32xf32, #tpu.memory_space<vmem>>) attributes {dimension_semantics = [#tpu.dimension_semantics<parallel>], iteration_bounds = array<i64: 1>, scalar_prefetch = 0 : i64, scratch_operands = 0 : i64, tpu.core_type = #tpu.core_type<tc>, window_params = [{transform_indices = @transform_0, window_bounds = array<i64: 1>}, {transform_indices = @transform_1, window_bounds = array<i64: 2, 8, 32>}, {transform_indices = @transform_2, window_bounds = array<i64: 8, 32>}, {transform_indices = @transform_3, window_bounds = array<i64: 2, 8, 32>}]} {
    %c0 = arith.constant 0 : index
    %c0_0 = arith.constant 0 : index
    %c0_1 = arith.constant 0 : index
    %0 = vector.load %arg2[%c0, %c0_0, %c0_1] : memref<2x8x32xf32, #tpu.memory_space<vmem>>, vector<2x8x32xf32>
    %c0_2 = arith.constant 0 : index
    %c0_3 = arith.constant 0 : index
    %1 = vector.load %arg3[%c0_2, %c0_3] : memref<8x32xf32, #tpu.memory_space<vmem>>, vector<8x32xf32>
    %2 = vector.shape_cast %1 : vector<8x32xf32> to vector<1x8x32xf32>
    %3 = vector.broadcast %2 : vector<1x8x32xf32> to vector<2x8x32xf32>
    %4 = arith.addf %0, %3 : vector<2x8x32xf32>
    %c0_4 = arith.constant 0 : index
    %c0_5 = arith.constant 0 : index
    %c0_6 = arith.constant 0 : index
    %5 = vector.load %arg4[%c0_4, %c0_5, %c0_6] : memref<2x8x32xf32, #tpu.memory_space<vmem>>, vector<2x8x32xf32>
    tpu.vector_store %arg4[%c0_4, %c0_5, %c0_6], %4 {strides = array<i32>} : memref<2x8x32xf32, #tpu.memory_space<vmem>>, vector<2x8x32xf32>,
    return
  }
  func.func @transform_0(%arg0: i32) -> i32 {
    %c0_i32 = arith.constant 0 : i32
    %c0_i32_0 = arith.constant 0 : i32
    return %c0_i32 : i32
  }
  func.func @transform_1(%arg0: i32) -> (i32, i32, i32) {
    %c0_i32 = arith.constant 0 : i32
    %c0_i32_0 = arith.constant 0 : i32
    %c0_i32_1 = arith.constant 0 : i32
    return %c0_i32, %arg0, %c0_i32_0 : i32, i32, i32
  }
  func.func @transform_2(%arg0: i32) -> (i32, i32) {
    %c0_i32 = arith.constant 0 : i32
    %c0_i32_0 = arith.constant 0 : i32
    return %arg0, %c0_i32 : i32, i32
  }
  func.func @transform_3(%arg0: i32) -> (i32, i32, i32) {
    %c0_i32 = arith.constant 0 : i32
    %c0_i32_0 = arith.constant 0 : i32
    %c0_i32_1 = arith.constant 0 : i32
    return %c0_i32, %arg0, %c0_i32_0 : i32, i32, i32
  }
}

</mosaic_0001>

<llo_original>
// kernel: tpu_custom_call.1
$region0: #{tpu_custom_call.1}
  #allocation0 [shape = 'u32[]', space=smem, size = 0x4, offset = 0x4, fixed_abs, tag = 'smem constant byte address 0x4 - core index']
  #allocation1 [shape = 'u32[144,128]{1,0:T(1,128)}', space=vmem, size = 0x12000, scoped, tag = 'internal scratch']
  #allocation2 [shape = 's32[1]{0:T(128)S(6)}', space=smem, size = 0x200, scoped, tag = 'scoped memory for tpu_custom_call.1']
  %s0 = inlined_call_operand.<no memory space> [shape: s32[1], index: 0, kind: input, shape index: {}]
  %s1 = inlined_call_operand.hbm [shape: f32[2,8,32], index: 1, kind: input, shape index: {}]
  %s2 = inlined_call_operand.hbm [shape: f32[8,32], index: 2, kind: input, shape index: {}]
  %s3 = inlined_call_operand.hbm [shape: f32[2,8,32], index: 3, kind: output, shape index: {}]
  %s4 = sld [smem:[#allocation0]]
  $region30: #{tpu_custom_call.1} parent=0
    _
  %s6 = ssub.s32 1, %s4
  %s7 = scalar_select 0, %s6, %s4
  %8 = sst [smem:[#allocation2]] %s0
  $region1: #{tpu_custom_call.1} parent=0
    #allocation3 [shape = 'u8[8192]{0}', space=vmem, size = 0x2000, scoped, tag = 'input window, operand 1, single buffered']
    #allocation4 [shape = 's32[1]{0}', space=sflag, size = 0x4, scoped, tag = 'scoped memory for tpu_custom_call.1']
    #allocation5 [shape = 's32[1]{0}', space=sflag, size = 0x4, scoped, tag = 'scoped memory for tpu_custom_call.1']
    #allocation6 [shape = 'u8[4096]{0}', space=vmem, size = 0x1000, scoped, tag = 'input window, operand 2, single buffered']
    #allocation7 [shape = 's32[1]{0}', space=sflag, size = 0x4, scoped, tag = 'scoped memory for tpu_custom_call.1']
    #allocation8 [shape = 'u8[8192]{0}', space=vmem, size = 0x2000, scoped, tag = 'output window, operand 0, single buffered']
    %9 = vsyncpa [#allocation4], 0
    %10 = vsyncpa [#allocation7], 0
    %11 = vsyncpa [#allocation5], 0
    // Predicated region
    $region2: #{tpu_custom_call.1} parent=1 // pred_check
      _
    $region3: #{tpu_custom_call.1} parent=1 // pred_check_branch
      %13 = sbr.rel (0) target = $region5
    $region4: #{tpu_custom_call.1} parent=1 // pred_region
      _
    $region5: #{tpu_custom_call.1} parent=1 // pred_fallthru
      _
    // Predicated region
    $region6: #{tpu_custom_call.1} parent=1 // pred_check
      _
    $region7: #{tpu_custom_call.1} parent=1 // pred_check_branch
      %15 = sbr.rel (0) target = $region9
    $region8: #{tpu_custom_call.1} parent=1 // pred_region
      %s17 = ssub.s32 256, 256
      %18 = vsyncadd [#allocation4], %s17
      %s19 = sshll.u32 [#allocation3], 4
      %s20 = int_to_ptr.vmem [resolvable:$true] %s19
      %25 = dma.hbm_to_vmem [thread:$0]  %s1, 256, %s20, [#allocation4], 128, 128, 8
    $region9: #{tpu_custom_call.1} parent=1 // pred_fallthru
      _
    // Predicated region
    $region10: #{tpu_custom_call.1} parent=1 // pred_check
      _
    $region11: #{tpu_custom_call.1} parent=1 // pred_check_branch
      %27 = sbr.rel (0) target = $region13
    $region12: #{tpu_custom_call.1} parent=1 // pred_region
      %s29 = ssub.s32 128, 128
      %30 = vsyncadd [#allocation7], %s29
      %s32 = sshll.u32 [#allocation6], 4
      %s33 = int_to_ptr.vmem [resolvable:$true] %s32
      %35 = dma.hbm_to_vmem [thread:$0]  %s2, 128, %s33, [#allocation7]
    $region13: #{tpu_custom_call.1} parent=1 // pred_fallthru
      _
    // Predicated region
    $region14: #{tpu_custom_call.1} parent=1 // pred_check
      _
    $region15: #{tpu_custom_call.1} parent=1 // pred_check_branch
      %37 = sbr.rel (0) target = $region17
    $region16: #{tpu_custom_call.1} parent=1 // pred_region
      %38 = dma.done [#allocation4], 256
    $region17: #{tpu_custom_call.1} parent=1 // pred_fallthru
      _
    // Predicated region
    $region18: #{tpu_custom_call.1} parent=1 // pred_check
      _
    $region19: #{tpu_custom_call.1} parent=1 // pred_check_branch
      %40 = sbr.rel (0) target = $region21
    $region20: #{tpu_custom_call.1} parent=1 // pred_region
      %41 = dma.done [#allocation7], 128
    $region21: #{tpu_custom_call.1} parent=1 // pred_fallthru
      _
    %v42 = vld [vmem:[#allocation3] sm:$0xff]
    %v43 = vld [vmem:[#allocation3 + $0x8] sm:$0xff]
    %v44 = vld [vmem:[#allocation6] sm:$0xff]
    %v45 = vadd.f32 %v42, %v44
    %v46 = vadd.f32 %v43, %v44
    %vm47 = vcmask 261120
    %48 = vst.msk [vmem:[#allocation8] sm:$0xff] %vm47, %v45
    %49 = vst.msk [vmem:[#allocation8 + $0x8] sm:$0xff] %vm47, %v46
    // Predicated region
    $region22: #{tpu_custom_call.1} parent=1 // pred_check
      _
    $region23: #{tpu_custom_call.1} parent=1 // pred_check_branch
      %51 = sbr.rel (0) target = $region25
    $region24: #{tpu_custom_call.1} parent=1 // pred_region
      %s53 = ssub.s32 256, 256
      %54 = vsyncadd [#allocation5], %s53
      %s55 = sshll.u32 [#allocation8], 4
      %s56 = int_to_ptr.vmem [resolvable:$true] %s55
      %61 = dma.vmem_to_hbm [thread:$0]  %s56, 256, %s3, [#allocation5], 128, 128, 8
    $region25: #{tpu_custom_call.1} parent=1 // pred_fallthru
      _
    // Predicated region
    $region26: #{tpu_custom_call.1} parent=1 // pred_check
      _
    $region27: #{tpu_custom_call.1} parent=1 // pred_check_branch
      %63 = sbr.rel (0) target = $region29
    $region28: #{tpu_custom_call.1} parent=1 // pred_region
      %64 = dma.done [#allocation5], 256
    $region29: #{tpu_custom_call.1} parent=1 // pred_fallthru
      _
    %65 = vsyncpa [#allocation4], 1
    %66 = vsyncpa [#allocation7], 1
    %67 = vsyncpa [#allocation5], 1

</llo_original>
